<compile_context>
chip_gen: v6e
topology: v6e:2x2x1
jax: 0.10.0
libtpu: 0.0.40
codegen_flags: <defaults>
</compile_context>

<pallas_src>
import functools
import math

import jax
import jax.numpy as jnp
from jax.experimental import pallas as pl
from jax.experimental.pallas import tpu as pltpu

_HALF_LOG_2PI = 0.5 * math.log(2.0 * math.pi)
_LOG_2 = math.log(2.0)


def _round_up(x, m):
    return ((x + m - 1) // m) * m


def _actor_kernel(state_ref, eps_ref, w1_ref, b1_ref, w2_ref, b2_ref,
                  wh_ref, bh_ref, out_ref, *, act_limit):
    S = state_ref.shape[0]           # states (feature axis on sublanes)
    A = eps_ref.shape[0]             # actions

    x = state_ref[...]               # (S, TB) f32 — batch on the lane axis

    # ---- layer 1: fan-in S is tiny (2), so use VPU outer-product accumulation
    # instead of a ~98%-padded MXU pass. Falls back to the MXU for larger S.
    w1 = w1_ref[...]                 # (H1, S)
    if S <= 8:
        acc = w1[:, 0:1] * x[0:1, :]
        for s in range(1, S):
            acc = acc + w1[:, s:s + 1] * x[s:s + 1, :]
        h = acc + b1_ref[...]
    else:
        h = jnp.dot(w1, x, preferred_element_type=jnp.float32) + b1_ref[...]
    h = jnp.maximum(h, 0.0)                                        # (H1, TB)

    # ---- layer 2 (MXU, f32 accumulate)
    h = jnp.dot(w2_ref[...], h, preferred_element_type=jnp.float32) + b2_ref[...]
    h = jnp.maximum(h, 0.0)                                        # (H2, TB)

    # ---- fused mean / log_std heads: one (2A, H2) matmul, slice rows after.
    head = jnp.dot(wh_ref[...], h,
                   preferred_element_type=jnp.float32) + bh_ref[...]   # (2A, TB)
    mu = head[:A, :]
    log_std = jnp.clip(head[A:, :], -20.0, 2.0)
    std = jnp.exp(log_std)

    eps = eps_ref[...]                                             # (A, TB)
    u = mu + std * eps                                             # rsample

    # Normal(mu, std).log_prob(u) == -0.5*eps^2 - log_std - 0.5*log(2*pi)
    logp = -0.5 * (eps * eps) - log_std - _HALF_LOG_2PI
    log_mu = jnp.sum(logp, axis=0, keepdims=True)                  # (1, TB)

    # tanh-squash correction: sum_A 2*(log 2 - u - softplus(-2u))
    n2u = -2.0 * u
    softplus = jnp.maximum(n2u, 0.0) + jnp.log1p(jnp.exp(-jnp.abs(n2u)))
    corr = jnp.sum(2.0 * (_LOG_2 - u - softplus), axis=0, keepdims=True)
    log_pi = log_mu - corr                                         # (1, TB)

    action = jnp.tanh(u)
    if float(act_limit) != 1.0:      # static python float -> resolved at trace time
        action = action * act_limit

    # Packed output: rows 0..A-1 = action^T, row A = log_pi (one lane-dense store).
    out_ref[...] = jnp.concatenate([action, log_pi], axis=0).astype(out_ref.dtype)


@functools.partial(jax.jit, static_argnames=("act_limit", "block_b"))
def actor_forward(state, eps, w1, b1, w2, b2, wm, bm, ws, bs, *,
                  act_limit=1.0, block_b=1024):
    """Returns (action (B, A), log_pi (1, B)) matching the PyTorch forward.

    NOTE: in an RL inner loop, the transpose/pad of the inputs and the final
    slice/transpose below are separate XLA ops and dominate the few-microsecond
    kernel; callers that already hold feature-major (S, B) data should feed the
    pallas_call directly in that layout (and pre-fuse wm/ws, bm/bs once).
    """
    B, S = state.shape
    H1 = w1.shape[0]
    H2 = w2.shape[0]
    A = wm.shape[0]

    # ---- tile sizing (lane axis = batch) ------------------------------------
    # * clamp to the rounded-up batch so tiny rollout batches don't DMA dead lanes
    # * keep a multiple of 256 (v6e/v7x MXU column width) once B is big enough
    # * keep >= 2 grid steps for large batches so v7x's two TCs both get work
    lane_mult = 128 if B <= 128 else 256
    tb = min(int(block_b), _round_up(B, lane_mult))
    if B > 512:
        tb = min(tb, _round_up(pl.cdiv(_round_up(B, 256), 2), 256))
    b_pad = _round_up(B, tb)
    grid = (b_pad // tb,)

    # Feature-major, lane-padded inputs: batch on the lane (last) axis.
    state_t = jnp.pad(state.astype(jnp.float32).T, ((0, 0), (0, b_pad - B)))
    eps_t = jnp.pad(eps.astype(jnp.float32).T, ((0, 0), (0, b_pad - B)))

    # Fuse the two width-A heads into a single (2A, H2) matmul.
    wh = jnp.concatenate([wm, ws], axis=0).astype(jnp.float32)     # (2A, H2)
    bh = jnp.concatenate([bm, bs], axis=0).astype(jnp.float32)     # (2A, 1)

    resident = lambda i: (0, 0)      # weights/biases: fetched once, stay in VMEM
    batch_tile = lambda i: (0, i)    # state/eps/output: new batch tile per step

    packed = pl.pallas_call(
        functools.partial(_actor_kernel, act_limit=float(act_limit)),
        out_shape=jax.ShapeDtypeStruct((A + 1, b_pad), jnp.float32),
        grid_spec=pltpu.PrefetchScalarGridSpec(
            num_scalar_prefetch=0,
            grid=grid,
            in_specs=[
                pl.BlockSpec((S, tb), batch_tile),       # state^T
                pl.BlockSpec((A, tb), batch_tile),       # eps^T
                pl.BlockSpec((H1, S), resident),         # W1
                pl.BlockSpec((H1, 1), resident),         # b1
                pl.BlockSpec((H2, H1), resident),        # W2
                pl.BlockSpec((H2, 1), resident),         # b2
                pl.BlockSpec((2 * A, H2), resident),     # [Wm; Ws]
                pl.BlockSpec((2 * A, 1), resident),      # [bm; bs]
            ],
            out_specs=pl.BlockSpec((A + 1, tb), batch_tile),  # [action^T; log_pi]
        ),
        compiler_params=pltpu.CompilerParams(
            dimension_semantics=("parallel",),           # v7x: shard tiles over 2 TCs
        ),
    )(state_t, eps_t,
      w1.astype(jnp.float32), b1.astype(jnp.float32),
      w2.astype(jnp.float32), b2.astype(jnp.float32),
      wh, bh)

    action = packed[:A, :B].T          # (B, A)
    log_pi = packed[A:, :B]            # (1, B)
    return action, log_pi


def actor_reference(state, eps, w1, b1, w2, b2, wm, bm, ws, bs, *, act_limit):
    """Pure-JAX f32 reference mirroring the PyTorch module math (batch-major)."""
    h = jnp.maximum(state @ w1.T + b1[:, 0], 0.0)
    h = jnp.maximum(h @ w2.T + b2[:, 0], 0.0)
    mu = h @ wm.T + bm[:, 0]
    log_std = jnp.clip(h @ ws.T + bs[:, 0], -20.0, 2.0)
    std = jnp.exp(log_std)
    u = mu + std * eps
    logp = -0.5 * eps * eps - log_std - _HALF_LOG_2PI
    log_mu = jnp.sum(logp, axis=-1)
    sp = jax.nn.softplus(-2.0 * u)
    corr = jnp.sum(2.0 * (_LOG_2 - u - sp), axis=-1)
    log_pi = (log_mu - corr)[None, :]
    action = jnp.tanh(u) * act_limit
    return action, log_pi


def init_params(key, num_states, num_actions, num_hidden_l1, num_hidden_l2):
    """nn.Linear-style U(-1/sqrt(fan_in), 1/sqrt(fan_in)) init.

    Weights use PyTorch's natural (out_features, in_features) layout; biases are
    stored as (out_features, 1) columns so they broadcast along the lane (batch)
    axis inside the kernel with no in-kernel reshapes.
    """
    ks = jax.random.split(key, 8)

    def linear(kw, kb, fan_in, fan_out):
        bound = 1.0 / math.sqrt(fan_in)
        w = jax.random.uniform(kw, (fan_out, fan_in), jnp.float32, -bound, bound)
        b = jax.random.uniform(kb, (fan_out, 1), jnp.float32, -bound, bound)
        return w, b

    w1, b1 = linear(ks[0], ks[1], num_states, num_hidden_l1)
    w2, b2 = linear(ks[2], ks[3], num_hidden_l1, num_hidden_l2)
    wm, bm = linear(ks[4], ks[5], num_hidden_l2, num_actions)
    ws, bs = linear(ks[6], ks[7], num_hidden_l2, num_actions)
    return w1, b1, w2, b2, wm, bm, ws, bs


if __name__ == "__main__":
    # MountainCarContinuous-style SAC actor: 2 states, 1 action, 32/32 hidden.
    num_states = 2
    num_actions = 1
    num_hidden_l1 = 32
    num_hidden_l2 = 32
    act_limit = 1.0

    key = jax.random.PRNGKey(0)
    k_params, k_data = jax.random.split(key)
    params = init_params(k_params, num_states, num_actions,
                         num_hidden_l1, num_hidden_l2)

    # batch=2 (tiny rollout, clamped tile), batch=300 (padding within one tile),
    # batch=1536 (exercises the multi-step "parallel" grid / two-TC split).
    for batch in (2, 300, 1536):
        k_state, k_eps = jax.random.split(jax.random.fold_in(k_data, batch))
        state = jax.random.normal(k_state, (batch, num_states), jnp.float32)
        eps = jax.random.normal(k_eps, (batch, num_actions), jnp.float32)

        action, log_pi = actor_forward(state, eps, *params, act_limit=act_limit)
        jax.block_until_ready((action, log_pi))

        ref_action, ref_log_pi = actor_reference(state, eps, *params,
                                                 act_limit=act_limit)
        assert action.shape == (batch, num_actions)
        assert log_pi.shape == (1, batch)
        assert jnp.allclose(action, ref_action, atol=1e-4, rtol=1e-4)
        assert jnp.allclose(log_pi, ref_log_pi, atol=1e-4, rtol=1e-4)

    print("KERNEL_OK")
</pallas_src>

<mosaic_0001>
module attributes {stable_mosaic.version = 11 : i64} {
  func.func @_actor_kernel(%arg0: i32, %arg1: memref<2x128xf32, #tpu.memory_space<vmem>>, %arg2: memref<1x128xf32, #tpu.memory_space<vmem>>, %arg3: memref<32x2xf32, #tpu.memory_space<vmem>>, %arg4: memref<32x1xf32, #tpu.memory_space<vmem>>, %arg5: memref<32x32xf32, #tpu.memory_space<vmem>>, %arg6: memref<32x1xf32, #tpu.memory_space<vmem>>, %arg7: memref<2x32xf32, #tpu.memory_space<vmem>>, %arg8: memref<2x1xf32, #tpu.memory_space<vmem>>, %arg9: memref<2x128xf32, #tpu.memory_space<vmem>>) attributes {dimension_semantics = [#tpu.dimension_semantics<parallel>], iteration_bounds = array<i64: 1>, scalar_prefetch = 0 : i64, scratch_operands = 0 : i64, tpu.core_type = #tpu.core_type<tc>, window_params = [{transform_indices = @transform_0, window_bounds = array<i64: 2, 128>}, {transform_indices = @transform_1, window_bounds = array<i64: 1, 128>}, {pipeline_mode = #tpu.pipeline_mode<synchronous>, transform_indices = @transform_2, window_bounds = array<i64: 32, 2>}, {pipeline_mode = #tpu.pipeline_mode<synchronous>, transform_indices = @transform_3, window_bounds = array<i64: 32, 1>}, {pipeline_mode = #tpu.pipeline_mode<synchronous>, transform_indices = @transform_4, window_bounds = array<i64: 32, 32>}, {pipeline_mode = #tpu.pipeline_mode<synchronous>, transform_indices = @transform_5, window_bounds = array<i64: 32, 1>}, {pipeline_mode = #tpu.pipeline_mode<synchronous>, transform_indices = @transform_6, window_bounds = array<i64: 2, 32>}, {pipeline_mode = #tpu.pipeline_mode<synchronous>, transform_indices = @transform_7, window_bounds = array<i64: 2, 1>}, {transform_indices = @transform_8, window_bounds = array<i64: 2, 128>}]} {
    %c0 = arith.constant 0 : index
    %c0_0 = arith.constant 0 : index
    %0 = vector.load %arg1[%c0, %c0_0] : memref<2x128xf32, #tpu.memory_space<vmem>>, vector<2x128xf32>
    %c0_1 = arith.constant 0 : index
    %c0_2 = arith.constant 0 : index
    %1 = vector.load %arg3[%c0_1, %c0_2] : memref<32x2xf32, #tpu.memory_space<vmem>>, vector<32x2xf32>
    %2 = vector.extract_strided_slice %1 {offsets = [0, 0], sizes = [32, 1], strides = [1, 1]} : vector<32x2xf32> to vector<32x1xf32>
    %3 = vector.extract_strided_slice %0 {offsets = [0, 0], sizes = [1, 128], strides = [1, 1]} : vector<2x128xf32> to vector<1x128xf32>
    %4 = vector.broadcast %2 : vector<32x1xf32> to vector<32x128xf32>
    %5 = vector.broadcast %3 : vector<1x128xf32> to vector<32x128xf32>
    %6 = arith.mulf %4, %5 : vector<32x128xf32>
    %7 = vector.extract_strided_slice %1 {offsets = [0, 1], sizes = [32, 1], strides = [1, 1]} : vector<32x2xf32> to vector<32x1xf32>
    %8 = vector.extract_strided_slice %0 {offsets = [1, 0], sizes = [1, 128], strides = [1, 1]} : vector<2x128xf32> to vector<1x128xf32>
    %9 = vector.broadcast %7 : vector<32x1xf32> to vector<32x128xf32>
    %10 = vector.broadcast %8 : vector<1x128xf32> to vector<32x128xf32>
    %11 = arith.mulf %9, %10 : vector<32x128xf32>
    %12 = arith.addf %6, %11 : vector<32x128xf32>
    %c0_3 = arith.constant 0 : index
    %c0_4 = arith.constant 0 : index
    %13 = vector.load %arg4[%c0_3, %c0_4] : memref<32x1xf32, #tpu.memory_space<vmem>>, vector<32x1xf32>
    %14 = vector.broadcast %13 : vector<32x1xf32> to vector<32x128xf32>
    %15 = arith.addf %12, %14 : vector<32x128xf32>
    %cst = arith.constant 0.000000e+00 : f32
    %16 = vector.broadcast %cst : f32 to vector<32x128xf32>
    %17 = arith.maximumf %15, %16 : vector<32x128xf32>
    %c0_5 = arith.constant 0 : index
    %c0_6 = arith.constant 0 : index
    %18 = vector.load %arg5[%c0_5, %c0_6] : memref<32x32xf32, #tpu.memory_space<vmem>>, vector<32x32xf32>
    %cst_7 = arith.constant dense<0.000000e+00> : vector<32x128xf32>
    %19 = tpu.matmul %18, %17, %cst_7 {dimension_numbers = #tpu.dot_dimension_numbers<[1], [0], [0], [1], [0, 0, 1, 1], [], []>} : vector<32x32xf32>, vector<32x128xf32>, vector<32x128xf32> -> vector<32x128xf32>
    %c0_8 = arith.constant 0 : index
    %c0_9 = arith.constant 0 : index
    %20 = vector.load %arg6[%c0_8, %c0_9] : memref<32x1xf32, #tpu.memory_space<vmem>>, vector<32x1xf32>
    %21 = vector.broadcast %20 : vector<32x1xf32> to vector<32x128xf32>
    %22 = arith.addf %19, %21 : vector<32x128xf32>
    %cst_10 = arith.constant 0.000000e+00 : f32
    %23 = vector.broadcast %cst_10 : f32 to vector<32x128xf32>
    %24 = arith.maximumf %22, %23 : vector<32x128xf32>
    %c0_11 = arith.constant 0 : index
    %c0_12 = arith.constant 0 : index
    %25 = vector.load %arg7[%c0_11, %c0_12] : memref<2x32xf32, #tpu.memory_space<vmem>>, vector<2x32xf32>
    %cst_13 = arith.constant dense<0.000000e+00> : vector<2x128xf32>
    %26 = tpu.matmul %25, %24, %cst_13 {dimension_numbers = #tpu.dot_dimension_numbers<[1], [0], [0], [1], [0, 0, 1, 1], [], []>} : vector<2x32xf32>, vector<32x128xf32>, vector<2x128xf32> -> vector<2x128xf32>
    %c0_14 = arith.constant 0 : index
    %c0_15 = arith.constant 0 : index
    %27 = vector.load %arg8[%c0_14, %c0_15] : memref<2x1xf32, #tpu.memory_space<vmem>>, vector<2x1xf32>
    %28 = vector.broadcast %27 : vector<2x1xf32> to vector<2x128xf32>
    %29 = arith.addf %26, %28 : vector<2x128xf32>
    %30 = vector.extract_strided_slice %29 {offsets = [0, 0], sizes = [1, 128], strides = [1, 1]} : vector<2x128xf32> to vector<1x128xf32>
    %31 = vector.extract_strided_slice %29 {offsets = [1, 0], sizes = [1, 128], strides = [1, 1]} : vector<2x128xf32> to vector<1x128xf32>
    %cst_16 = arith.constant -2.000000e+01 : f32
    %cst_17 = arith.constant 2.000000e+00 : f32
    %32 = vector.broadcast %cst_16 : f32 to vector<1x128xf32>
    %33 = arith.maximumf %32, %31 : vector<1x128xf32>
    %34 = vector.broadcast %cst_17 : f32 to vector<1x128xf32>
    %35 = arith.minimumf %34, %33 : vector<1x128xf32>
    %36 = math.exp %35 : vector<1x128xf32>
    %c0_18 = arith.constant 0 : index
    %c0_19 = arith.constant 0 : index
    %37 = vector.load %arg2[%c0_18, %c0_19] : memref<1x128xf32, #tpu.memory_space<vmem>>, vector<1x128xf32>
    %38 = arith.mulf %36, %37 : vector<1x128xf32>
    %39 = arith.addf %30, %38 : vector<1x128xf32>
    %40 = arith.mulf %37, %37 : vector<1x128xf32>
    %cst_20 = arith.constant -5.000000e-01 : f32
    %41 = vector.broadcast %cst_20 : f32 to vector<1x128xf32>
    %42 = arith.mulf %41, %40 : vector<1x128xf32>
    %43 = arith.subf %42, %35 : vector<1x128xf32>
    %cst_21 = arith.constant 0.918938517 : f32
    %44 = vector.broadcast %cst_21 : f32 to vector<1x128xf32>
    %45 = arith.subf %43, %44 : vector<1x128xf32>
    %cst_22 = arith.constant dense<0.000000e+00> : vector<128xf32>
    %46 = vector.multi_reduction <add>, %45, %cst_22 [0] : vector<1x128xf32> to vector<128xf32>
    %47 = vector.shape_cast %46 : vector<128xf32> to vector<1x128xf32>
    %cst_23 = arith.constant -2.000000e+00 : f32
    %48 = vector.broadcast %cst_23 : f32 to vector<1x128xf32>
    %49 = arith.mulf %48, %39 : vector<1x128xf32>
    %cst_24 = arith.constant 0.000000e+00 : f32
    %50 = vector.broadcast %cst_24 : f32 to vector<1x128xf32>
    %51 = arith.maximumf %49, %50 : vector<1x128xf32>
    %52 = math.absf %49 : vector<1x128xf32>
    %cst_25 = arith.constant 0.000000e+00 : f32
    %53 = vector.broadcast %cst_25 : f32 to vector<1x128xf32>
    %54 = arith.subf %53, %52 : vector<1x128xf32>
    %55 = math.exp %54 : vector<1x128xf32>
    %56 = math.log1p %55 : vector<1x128xf32>
    %57 = arith.addf %51, %56 : vector<1x128xf32>
    %cst_26 = arith.constant 0.693147182 : f32
    %58 = vector.broadcast %cst_26 : f32 to vector<1x128xf32>
    %59 = arith.subf %58, %39 : vector<1x128xf32>
    %60 = arith.subf %59, %57 : vector<1x128xf32>
    %cst_27 = arith.constant 2.000000e+00 : f32
    %61 = vector.broadcast %cst_27 : f32 to vector<1x128xf32>
    %62 = arith.mulf %61, %60 : vector<1x128xf32>
    %cst_28 = arith.constant dense<0.000000e+00> : vector<128xf32>
    %63 = vector.multi_reduction <add>, %62, %cst_28 [0] : vector<1x128xf32> to vector<128xf32>
    %64 = vector.shape_cast %63 : vector<128xf32> to vector<1x128xf32>
    %65 = arith.subf %47, %64 : vector<1x128xf32>
    %66 = math.tanh %39 : vector<1x128xf32>
    %67 = tpu.concatenate %66, %65 in 0 : vector<1x128xf32>, vector<1x128xf32> -> vector<2x128xf32>
    %c0_29 = arith.constant 0 : index
    %c0_30 = arith.constant 0 : index
    %68 = vector.load %arg9[%c0_29, %c0_30] : memref<2x128xf32, #tpu.memory_space<vmem>>, vector<2x128xf32>
    tpu.vector_store %arg9[%c0_29, %c0_30], %67 {strides = array<i32>} : memref<2x128xf32, #tpu.memory_space<vmem>>, vector<2x128xf32>,
    return
  }
  func.func @transform_0(%arg0: i32) -> (i32, i32) {
    %c0_i32 = arith.constant 0 : i32
    %c0_i32_0 = arith.constant 0 : i32
    return %c0_i32, %arg0 : i32, i32
  }
  func.func @transform_1(%arg0: i32) -> (i32, i32) {
    %c0_i32 = arith.constant 0 : i32
    %c0_i32_0 = arith.constant 0 : i32
    return %c0_i32, %arg0 : i32, i32
  }
  func.func @transform_2(%arg0: i32) -> (i32, i32) {
    %c0_i32 = arith.constant 0 : i32
    %c0_i32_0 = arith.constant 0 : i32
    %c0_i32_1 = arith.constant 0 : i32
    return %c0_i32, %c0_i32_0 : i32, i32
  }
  func.func @transform_3(%arg0: i32) -> (i32, i32) {
    %c0_i32 = arith.constant 0 : i32
    %c0_i32_0 = arith.constant 0 : i32
    %c0_i32_1 = arith.constant 0 : i32
    return %c0_i32, %c0_i32_0 : i32, i32
  }
  func.func @transform_4(%arg0: i32) -> (i32, i32) {
    %c0_i32 = arith.constant 0 : i32
    %c0_i32_0 = arith.constant 0 : i32
    %c0_i32_1 = arith.constant 0 : i32
    return %c0_i32, %c0_i32_0 : i32, i32
  }
  func.func @transform_5(%arg0: i32) -> (i32, i32) {
    %c0_i32 = arith.constant 0 : i32
    %c0_i32_0 = arith.constant 0 : i32
    %c0_i32_1 = arith.constant 0 : i32
    return %c0_i32, %c0_i32_0 : i32, i32
  }
  func.func @transform_6(%arg0: i32) -> (i32, i32) {
    %c0_i32 = arith.constant 0 : i32
    %c0_i32_0 = arith.constant 0 : i32
    %c0_i32_1 = arith.constant 0 : i32
    return %c0_i32, %c0_i32_0 : i32, i32
  }
  func.func @transform_7(%arg0: i32) -> (i32, i32) {
    %c0_i32 = arith.constant 0 : i32
    %c0_i32_0 = arith.constant 0 : i32
    %c0_i32_1 = arith.constant 0 : i32
    return %c0_i32, %c0_i32_0 : i32, i32
  }
  func.func @transform_8(%arg0: i32) -> (i32, i32) {
    %c0_i32 = arith.constant 0 : i32
    %c0_i32_0 = arith.constant 0 : i32
    return %c0_i32, %arg0 : i32, i32
  }
}

</mosaic_0001>

<llo_original>
// kernel: actor_forward.1
$region0: #{actor_forward.1}
  #allocation0 [shape = 'u32[]', space=smem, size = 0x4, offset = 0x4, fixed_abs, tag = 'smem constant byte address 0x4 - core index']
  #allocation1 [shape = 'u32[144,128]{1,0:T(1,128)}', space=vmem, size = 0x12000, scoped, tag = 'internal scratch']
  %s0 = inlined_call_operand.vmem [shape: f32[2,128], index: 0, kind: input, shape index: {}]
  %s1 = inlined_call_operand.vmem [shape: f32[1,128], index: 1, kind: input, shape index: {}]
  %s2 = inlined_call_operand.vmem [shape: f32[32,2], index: 2, kind: input, shape index: {}]
  %s3 = inlined_call_operand.vmem [shape: f32[32,1], index: 3, kind: input, shape index: {}]
  %s4 = inlined_call_operand.vmem [shape: f32[32,32], index: 4, kind: input, shape index: {}]
  %s5 = inlined_call_operand.vmem [shape: f32[32,1], index: 5, kind: input, shape index: {}]
  %s6 = inlined_call_operand.vmem [shape: f32[2,32], index: 6, kind: input, shape index: {}]
  %s7 = inlined_call_operand.vmem [shape: f32[2,1], index: 7, kind: input, shape index: {}]
  %s8 = inlined_call_operand.vmem [shape: f32[2,128], index: 8, kind: output, shape index: {}]
  %s9 = sld [smem:[#allocation0]]
  $region42: #{actor_forward.1} parent=0
    _
  %s11 = ssub.s32 1, %s9
  %s12 = scalar_select 0, %s11, %s9
  // Predicated region
  $region2: #{actor_forward.1} parent=0 // pred_check
    _
  $region3: #{actor_forward.1} parent=0 // pred_check_branch
    %14 = sbr.rel (0) target = $region5
  $region4: #{actor_forward.1} parent=0 // pred_region
    _
  $region5: #{actor_forward.1} parent=0 // pred_fallthru
    _
  // Predicated region
  $region6: #{actor_forward.1} parent=0 // pred_check
    _
  $region7: #{actor_forward.1} parent=0 // pred_check_branch
    %16 = sbr.rel (0) target = $region9
  $region8: #{actor_forward.1} parent=0 // pred_region
    _
  $region9: #{actor_forward.1} parent=0 // pred_fallthru
    _
  // Predicated region
  $region10: #{actor_forward.1} parent=0 // pred_check
    _
  $region11: #{actor_forward.1} parent=0 // pred_check_branch
    %18 = sbr.rel (0) target = $region13
  $region12: #{actor_forward.1} parent=0 // pred_region
    _
  $region13: #{actor_forward.1} parent=0 // pred_fallthru
    _
  // Predicated region
  $region14: #{actor_forward.1} parent=0 // pred_check
    _
  $region15: #{actor_forward.1} parent=0 // pred_check_branch
    %20 = sbr.rel (0) target = $region17
  $region16: #{actor_forward.1} parent=0 // pred_region
    _
  $region17: #{actor_forward.1} parent=0 // pred_fallthru
    _
  // Predicated region
  $region18: #{actor_forward.1} parent=0 // pred_check
    _
  $region19: #{actor_forward.1} parent=0 // pred_check_branch
    %22 = sbr.rel (0) target = $region21
  $region20: #{actor_forward.1} parent=0 // pred_region
    _
  $region21: #{actor_forward.1} parent=0 // pred_fallthru
    _
  // Predicated region
  $region22: #{actor_forward.1} parent=0 // pred_check
    _
  $region23: #{actor_forward.1} parent=0 // pred_check_branch
    %24 = sbr.rel (0) target = $region25
  $region24: #{actor_forward.1} parent=0 // pred_region
    _
  $region25: #{actor_forward.1} parent=0 // pred_fallthru
    _
  // Predicated region
  $region26: #{actor_forward.1} parent=0 // pred_check
    _
  $region27: #{actor_forward.1} parent=0 // pred_check_branch
    %26 = sbr.rel (0) target = $region29
  $region28: #{actor_forward.1} parent=0 // pred_region
    _
  $region29: #{actor_forward.1} parent=0 // pred_fallthru
    _
  // Predicated region
  $region30: #{actor_forward.1} parent=0 // pred_check
    _
  $region31: #{actor_forward.1} parent=0 // pred_check_branch
    %28 = sbr.rel (0) target = $region33
  $region32: #{actor_forward.1} parent=0 // pred_region
    _
  $region33: #{actor_forward.1} parent=0 // pred_fallthru
    _
  %v29 = vld [vmem:[%s0] sm:$0x3]
  %v30 = vld [vmem:[%s2] sm:$0xff]
  %v31 = vld [vmem:[%s2 + $0x8] sm:$0xff]
  %v32 = vld [vmem:[%s2 + $0x10] sm:$0xff]
  %v33 = vld [vmem:[%s2 + $0x18] sm:$0xff]
  %35 = vset.pattern.permute.xlu0 0
  %36 = vperm.xlu0 %35, %v30
  %v37 = vpop.permute.xlu0 %36
  %40 = vset.pattern.permute.xlu0 0
  %41 = vperm.xlu0 %40, %v31
  %v42 = vpop.permute.xlu0 %41
  %45 = vset.pattern.permute.xlu0 0
  %46 = vperm.xlu0 %45, %v32
  %v47 = vpop.permute.xlu0 %46
  %50 = vset.pattern.permute.xlu0 0
  %51 = vperm.xlu0 %50, %v33
  %v52 = vpop.permute.xlu0 %51
  %v54 = vlaneseq
  %v55 = vshrl.u32 %v54, 7
  %v56 = vsub.s32 0, %v55
  %v57 = vrot.slane %v29, %v56
  %v58 = vmul.f32 %v37, %v57
  %v59 = vmul.f32 %v42, %v57
  %v60 = vmul.f32 %v47, %v57
  %v61 = vmul.f32 %v52, %v57
  %62 = vset.pattern.permute.xlu0 1
  %63 = vperm.xlu0 %62, %v30
  %v64 = vpop.permute.xlu0 %63
  %66 = vset.pattern.permute.xlu0 1
  %67 = vperm.xlu0 %66, %v31
  %v68 = vpop.permute.xlu0 %67
  %70 = vset.pattern.permute.xlu0 1
  %71 = vperm.xlu0 %70, %v32
  %v72 = vpop.permute.xlu0 %71
  %74 = vset.pattern.permute.xlu0 1
  %75 = vperm.xlu0 %74, %v33
  %v76 = vpop.permute.xlu0 %75
  %v78 = vlaneseq
  %v79 = vshrl.u32 %v78, 7
  %v80 = vsub.s32 1, %v79
  %v81 = vrot.slane %v29, %v80
  %v82 = vmul.f32 %v64, %v81
  %v83 = vmul.f32 %v68, %v81
  %v84 = vmul.f32 %v72, %v81
  %v85 = vmul.f32 %v76, %v81
  %v86 = vadd.f32 %v58, %v82
  %v87 = vadd.f32 %v59, %v83
  %v88 = vadd.f32 %v60, %v84
  %v89 = vadd.f32 %v61, %v85
  %v90 = vld [vmem:[%s3] sm:$0xff]
  %v91 = vld [vmem:[%s3 + $0x8] sm:$0xff]
  %v92 = vld [vmem:[%s3 + $0x10] sm:$0xff]
  %v93 = vld [vmem:[%s3 + $0x18] sm:$0xff]
  %95 = vset.pattern.permute.xlu0 0
  %96 = vperm.xlu0 %95, %v90
  %v97 = vpop.permute.xlu0 %96
  %100 = vset.pattern.permute.xlu0 0
  %101 = vperm.xlu0 %100, %v91
  %v102 = vpop.permute.xlu0 %101
  %105 = vset.pattern.permute.xlu0 0
  %106 = vperm.xlu0 %105, %v92
  %v107 = vpop.permute.xlu0 %106
  %110 = vset.pattern.permute.xlu0 0
  %111 = vperm.xlu0 %110, %v93
  %v112 = vpop.permute.xlu0 %111
  %v114 = vadd.f32 %v86, %v97
  %v115 = vadd.f32 %v87, %v102
  %v116 = vadd.f32 %v88, %v107
  %v117 = vadd.f32 %v89, %v112
  %v118 = vmax.f32 %v114, 0.0
  %v119 = vmax.f32 %v115, 0.0
  %v120 = vmax.f32 %v116, 0.0
  %v121 = vmax.f32 %v117, 0.0
  %v122 = vld [vmem:[%s4] sm:$0xff]
  %v123 = vld [vmem:[%s4 + $0x8] sm:$0xff]
  %v124 = vld [vmem:[%s4 + $0x10] sm:$0xff]
  %v125 = vld [vmem:[%s4 + $0x18] sm:$0xff]
  %v126 = vld [vmem:[%s5] sm:$0xff]
  %v127 = vld [vmem:[%s5 + $0x8] sm:$0xff]
  %v128 = vld [vmem:[%s5 + $0x10] sm:$0xff]
  %v129 = vld [vmem:[%s5 + $0x18] sm:$0xff]
  %131 = vset.pattern.permute.xlu0 0
  %132 = vperm.xlu0 %131, %v126
  %v133 = vpop.permute.xlu0 %132
  %136 = vset.pattern.permute.xlu0 0
  %137 = vperm.xlu0 %136, %v127
  %v138 = vpop.permute.xlu0 %137
  %141 = vset.pattern.permute.xlu0 0
  %142 = vperm.xlu0 %141, %v128
  %v143 = vpop.permute.xlu0 %142
  %146 = vset.pattern.permute.xlu0 0
  %147 = vperm.xlu0 %146, %v129
  %v148 = vpop.permute.xlu0 %147
  %vm150 = vcmask 261120
  %v152 = vsel %vm150, %v122, 0
  %v155 = vsel %vm150, %v123, 0
  %v158 = vsel %vm150, %v124, 0
  %v161 = vsel %vm150, %v125, 0
  %163 = vmatprep.subr.mxu0 0.0
  %164 = vmatpush1.msra.mxu0 0.0
  %165 = vmatprep.subr.mxu0 0.0
  %166 = vmatpush1.msra.mxu0 0.0
  %167 = vmatprep.subr.mxu0 0.0
  %168 = vmatpush1.msra.mxu0 0.0
  %169 = vmatprep.subr.mxu0 0.0
  %170 = vmatpush1.msra.mxu0 0.0
  %171 = vmatprep.subr.mxu0 0.0
  %172 = vmatpush1.msra.mxu0 0.0
  %173 = vmatprep.subr.mxu0 0.0
  %174 = vmatpush1.msra.mxu0 0.0
  %175 = vmatprep.subr.mxu0 0.0
  %176 = vmatpush1.msra.mxu0 0.0
  %177 = vmatprep.subr.mxu0 0.0
  %178 = vmatpush1.msra.mxu0 0.0
  %179 = vmatprep.subr.mxu0 0.0
  %180 = vmatpush1.msra.mxu0 0.0
  %181 = vmatprep.subr.mxu0 0.0
  %182 = vmatpush1.msra.mxu0 0.0
  %183 = vmatprep.subr.mxu0 0.0
  %184 = vmatpush1.msra.mxu0 0.0
  %185 = vmatprep.subr.mxu0 0.0
  %186 = vmatpush1.msra.mxu0 0.0
  %187 = vmatprep.subr.mxu0 0.0
  %188 = vmatpush1.msra.mxu0 %v121
  %189 = vmatprep.subr.mxu0 0.0
  %190 = vmatpush1.msra.mxu0 %v120
  %191 = vmatprep.subr.mxu0 0.0
  %192 = vmatpush1.msra.mxu0 %v119
  %193 = vmatprep.subr.mxu0 0.0
  %194 = vmatpush1.msra.mxu0 %v118
  %195 = vmatprep.subr.mxu0 0.0
  %196 = vmatpush2.msra.mxu0 0.0
  %197 = vmatprep.subr.mxu0 0.0
  %198 = vmatpush2.msra.mxu0 0.0
  %199 = vmatprep.subr.mxu0 0.0
  %200 = vmatpush2.msra.mxu0 0.0
  %201 = vmatprep.subr.mxu0 0.0
  %202 = vmatpush2.msra.mxu0 0.0
  %203 = vmatprep.subr.mxu0 0.0
  %204 = vmatpush2.msra.mxu0 0.0
  %205 = vmatprep.subr.mxu0 0.0
  %206 = vmatpush2.msra.mxu0 0.0
  %207 = vmatprep.subr.mxu0 0.0
  %208 = vmatpush2.msra.mxu0 0.0
  %209 = vmatprep.subr.mxu0 0.0
  %210 = vmatpush2.msra.mxu0 0.0
  %211 = vmatprep.subr.mxu0 0.0
  %212 = vmatpush2.msra.mxu0 0.0
  %213 = vmatprep.subr.mxu0 0.0
  %214 = vmatpush2.msra.mxu0 0.0
  %215 = vmatprep.subr.mxu0 0.0
  %216 = vmatpush2.msra.mxu0 0.0
  %217 = vmatprep.subr.mxu0 0.0
  %218 = vmatpush2.msra.mxu0 0.0
  %219 = vmatprep.subr.mxu0 0.0
  %220 = vmatpush2.msra.mxu0 0.0
  %221 = vmatprep.subr.mxu0 0.0
  %222 = vmatpush2.msra.mxu0 0.0
  %223 = vmatprep.subr.mxu0 0.0
  %224 = vmatpush2.msra.mxu0 0.0
  %225 = vmatprep.subr.mxu0 0.0
  %226 = vmatpush2.msra.mxu0 0.0
  %227 = vmatprep.mubr.f32.mxu0 0.0
  %228 = vmatmul.mubr.f32.gmra.mxu0 %v152
  %v229 = vpop.f32.mrf.mxu0
  %v230 = vadd.f32 %v133, %v229
  %v231 = vpop.f32.mrf.mxu0
  %232 = vmatprep.mubr.f32.mxu0 0.0
  %233 = vmatmul.mubr.f32.gmra.mxu0 %v155
  %v234 = vpop.f32.mrf.mxu0
  %v235 = vadd.f32 %v138, %v234
  %v236 = vpop.f32.mrf.mxu0
  %237 = vmatprep.mubr.f32.mxu0 0.0
  %238 = vmatmul.mubr.f32.gmra.mxu0 %v158
  %v239 = vpop.f32.mrf.mxu0
  %v240 = vadd.f32 %v143, %v239
  %v241 = vpop.f32.mrf.mxu0
  %242 = vmatprep.mubr.f32.mxu0 0.0
  %243 = vmatmul.mubr.f32.gmra.mxu0 %v161
  %v244 = vpop.f32.mrf.mxu0
  %v245 = vadd.f32 %v148, %v244
  %v246 = vpop.f32.mrf.mxu0
  %247 = vdwg.mxu0
  %v248 = vmax.f32 %v230, 0.0
  %v249 = vmax.f32 %v235, 0.0
  %v250 = vmax.f32 %v240, 0.0
  %v251 = vmax.f32 %v245, 0.0
  %v252 = vld [vmem:[%s6] sm:$0x3]
  %v253 = vld [vmem:[%s7] sm:$0x3]
  %255 = vset.pattern.permute.xlu0 0
  %256 = vperm.xlu0 %255, %v253
  %v257 = vpop.permute.xlu0 %256
  %v260 = vsel %vm150, %v252, 0
  %262 = vmatprep.subr.mxu0 0.0
  %263 = vmatpush1.msra.mxu0 0.0
  %264 = vmatprep.subr.mxu0 0.0
  %265 = vmatpush1.msra.mxu0 0.0
  %266 = vmatprep.subr.mxu0 0.0
  %267 = vmatpush1.msra.mxu0 0.0
  %268 = vmatprep.subr.mxu0 0.0
  %269 = vmatpush1.msra.mxu0 0.0
  %270 = vmatprep.subr.mxu0 0.0
  %271 = vmatpush1.msra.mxu0 0.0
  %272 = vmatprep.subr.mxu0 0.0
  %273 = vmatpush1.msra.mxu0 0.0
  %274 = vmatprep.subr.mxu0 0.0
  %275 = vmatpush1.msra.mxu0 0.0
  %276 = vmatprep.subr.mxu0 0.0
  %277 = vmatpush1.msra.mxu0 0.0
  %278 = vmatprep.subr.mxu0 0.0
  %279 = vmatpush1.msra.mxu0 0.0
  %280 = vmatprep.subr.mxu0 0.0
  %281 = vmatpush1.msra.mxu0 0.0
  %282 = vmatprep.subr.mxu0 0.0
  %283 = vmatpush1.msra.mxu0 0.0
  %284 = vmatprep.subr.mxu0 0.0
  %285 = vmatpush1.msra.mxu0 0.0
  %286 = vmatprep.subr.mxu0 0.0
  %287 = vmatpush1.msra.mxu0 %v251
  %288 = vmatprep.subr.mxu0 0.0
  %289 = vmatpush1.msra.mxu0 %v250
  %290 = vmatprep.subr.mxu0 0.0
  %291 = vmatpush1.msra.mxu0 %v249
  %292 = vmatprep.subr.mxu0 0.0
  %293 = vmatpush1.msra.mxu0 %v248
  %294 = vmatprep.subr.mxu0 0.0
  %295 = vmatpush2.msra.mxu0 0.0
  %296 = vmatprep.subr.mxu0 0.0
  %297 = vmatpush2.msra.mxu0 0.0
  %298 = vmatprep.subr.mxu0 0.0
  %299 = vmatpush2.msra.mxu0 0.0
  %300 = vmatprep.subr.mxu0 0.0
  %301 = vmatpush2.msra.mxu0 0.0
  %302 = vmatprep.subr.mxu0 0.0
  %303 = vmatpush2.msra.mxu0 0.0
  %304 = vmatprep.subr.mxu0 0.0
  %305 = vmatpush2.msra.mxu0 0.0
  %306 = vmatprep.subr.mxu0 0.0
  %307 = vmatpush2.msra.mxu0 0.0
  %308 = vmatprep.subr.mxu0 0.0
  %309 = vmatpush2.msra.mxu0 0.0
  %310 = vmatprep.subr.mxu0 0.0
  %311 = vmatpush2.msra.mxu0 0.0
  %312 = vmatprep.subr.mxu0 0.0
  %313 = vmatpush2.msra.mxu0 0.0
  %314 = vmatprep.subr.mxu0 0.0
  %315 = vmatpush2.msra.mxu0 0.0
  %316 = vmatprep.subr.mxu0 0.0
  %317 = vmatpush2.msra.mxu0 0.0
  %318 = vmatprep.subr.mxu0 0.0
  %319 = vmatpush2.msra.mxu0 0.0
  %320 = vmatprep.subr.mxu0 0.0
  %321 = vmatpush2.msra.mxu0 0.0
  %322 = vmatprep.subr.mxu0 0.0
  %323 = vmatpush2.msra.mxu0 0.0
  %324 = vmatprep.subr.mxu0 0.0
  %325 = vmatpush2.msra.mxu0 0.0
  %326 = vmatprep.mubr.f32.mxu0 0.0
  %327 = vmatmul.mubr.f32.gmra.mxu0 %v260
  %v328 = vpop.f32.mrf.mxu0
  %v329 = vadd.f32 %v257, %v328
  %v330 = vpop.f32.mrf.mxu0
  %331 = vdwg.mxu0
  %v332 = vmax.f32 %v329, -20.0
  %v333 = vmin.f32 %v332, 2.0
  %v334 = vmul.f32 %v333, 1.442695
  %v335 = vpow.pop %v334
  %v336 = vld [vmem:[%s1] sm:$0x1]
  %v338 = vlaneseq
  %v339 = vshrl.u32 %v338, 7
  %v340 = vsub.s32 0, %v339
  %v341 = vrot.slane %v336, %v340
  %v343 = vmul.f32 %v335, %v341
  %v345 = vrot.slane %v343, 1
  %v347 = vadd.f32 %v329, %v345
  %v348 = vmul.f32 %v336, %v336
  %v349 = vmul.f32 %v348, -0.5
  %v352 = vunpack.c.l.s4 1966171168
  %v353 = vunpack.c.0.s8 %v352
  %v354 = vlaneseq
  %v355 = vshrl.u32 %v354, 7
  %v356 = vsub.s32 %v353, %v355
  %v357 = vrot.slane %v333, %v356
  %v358 = vcombine.high %v357, %v357
  %v360 = vunpack.c.l.s4 1966171168
  %v361 = vunpack.c.0.s8 %v360
  %v362 = vlaneseq
  %v363 = vshrl.u32 %v362, 7
  %v364 = vsub.s32 %v361, %v363
  %v365 = vrot.slane %v358, %v364
  %v367 = vsub.f32 %v349, %v365
  %v368 = vsub.f32 %v367, 0.9189385
  %v369 = vadd.f32 %v368, 0.0
  %v370 = vmul.f32 %v347, -2.0
  %v371 = vmax.f32 %v370, 0.0
  %v372 = vand.u32 2147483647, %v370
  %v373 = vsub.f32 0.0, %v372
  %v374 = vmul.f32 %v373, 1.442695
  %v375 = vpow.pop %v374
  %v376 = vadd.f32 %v375, 1.0
  %v377 = vlog2.pop %v376
  %v378 = vmul.f32 %v377, 0.6931472
  %v379 = vmul.f32 -0.5, %v375
  %v380 = vadd.f32 %v379, 1.0
  %v381 = vmul.f32 %v380, %v375
  %v382 = vand.u32 2147483647, %v375
  %vm383 = vcmp.lt.f32.partialorder %v382, 0.0004427343
  %v384 = vsel %vm383, %v381, %v378
  %v385 = vadd.f32 %v371, %v384
  %v386 = vsub.f32 0.6931472, %v347
  %v387 = vsub.f32 %v386, %v385
  %v388 = vmul.f32 %v387, 2.0
  %v389 = vadd.f32 %v388, 0.0
  %v390 = vsub.f32 %v369, %v389
  %v391 = vtanh.pop %v347
  %v393 = vlaneseq
  %v394 = vshrl.u32 %v393, 7
  %v395 = vsub.s32 0, %v394
  %v396 = vrot.slane %v390, %v395
  %vm398 = vcmask 1040384
  %v399 = vsel %vm398, %v391, %v396
  %400 = vst [vmem:[%s8] sm:$0x3] %v399
  // Predicated region
  $region34: #{actor_forward.1} parent=0 // pred_check
    _
  $region35: #{actor_forward.1} parent=0 // pred_check_branch
    %402 = sbr.rel (0) target = $region37
  $region36: #{actor_forward.1} parent=0 // pred_region
    _
  $region37: #{actor_forward.1} parent=0 // pred_fallthru
    _
  // Predicated region
  $region38: #{actor_forward.1} parent=0 // pred_check
    _
  $region39: #{actor_forward.1} parent=0 // pred_check_branch
    %404 = sbr.rel (0) target = $region41
  $region40: #{actor_forward.1} parent=0 // pred_region
    _
  $region41: #{actor_forward.1} parent=0 // pred_fallthru
    _

</llo_original>
